<compile_context>
chip_gen: v6e
topology: v6e:2x2x1
jax: 0.10.0
libtpu: 0.0.40
codegen_flags: <defaults>
</compile_context>

<pallas_src>
import jax
import jax.numpy as jnp
from jax.experimental import pallas as pl
from jax.experimental.pallas import tpu as pltpu


# ----------------------------- Pallas kernel -------------------------------

def mlp_q_kernel(x_ref, w1t_ref, b1_ref, w2t_ref, b2_ref, w3c_ref, b3_ref,
                 o_ref):
    """Transposed-layout MLP: all activations are (features, TB), lane-dense."""
    # Layer 1: (H1, F) @ (F, TB) -> (H1, TB); bias column broadcasts over lanes.
    h1 = jnp.dot(w1t_ref[...], x_ref[...], preferred_element_type=jnp.float32)
    h1 = jnp.maximum(h1 + b1_ref[...], 0.0)                       # ReLU (f32)
    # Layer 2: (H2, H1) @ (H1, TB) -> (H2, TB).
    h2 = jnp.dot(w2t_ref[...], h1.astype(w2t_ref.dtype),
                 preferred_element_type=jnp.float32)
    h2 = jnp.maximum(h2 + b2_ref[...], 0.0)                       # ReLU (f32)
    # Layer 3 (output width 1): broadcast multiply + sublane reduction
    # -> lane-dense (1, TB) row, no relayout needed.
    q = jnp.sum(h2 * w3c_ref[...], axis=0, keepdims=True) + b3_ref[...]
    o_ref[...] = q.astype(o_ref.dtype)


# ------------------------------- wrapper ------------------------------------

def _round_up(x, m):
    return ((x + m - 1) // m) * m


def _pick_tile(batch, block_b):
    """Batch tile: lane-dense (>=128) and >=2 tiles for v7x megacore when
    the batch is big enough; tiny batches get one sublane-aligned tile."""
    assert block_b % 128 == 0
    if batch <= 128:
        return _round_up(batch, 8)
    tb = _round_up(-(-batch // 2), 128)       # ceil(batch/2) rounded to lanes
    return min(tb, block_b)


def mlp_q_forward(params, time, obs, act, scale=1.0, block_b=4096,
                  compute_dtype=jnp.bfloat16):
    """Equivalent of MLPQFunction.forward(time, obs, act, scale) for 2-D obs/act."""
    w1, b1, w2, b2, w3, b3 = params
    B, obs_dim = obs.shape
    act_dim = act.shape[-1]
    in_dim = obs_dim + act_dim
    h1_dim = w1.shape[1]
    h2_dim = w2.shape[1]

    # Fold the constant time/scale column of layer 1 into its bias (f32).
    t = jnp.asarray(time, jnp.float32) / jnp.asarray(scale, jnp.float32)
    b1_col = (b1 + t * w1[0, :]).reshape(-1, 1).astype(jnp.float32)   # (H1, 1)
    b2_col = b2.reshape(-1, 1).astype(jnp.float32)                    # (H2, 1)
    w3_col = w3.reshape(-1, 1).astype(jnp.float32)                    # (H2, 1)
    b3_s = b3.reshape(1, 1).astype(jnp.float32)                       # (1, 1)

    # Pre-transposed weights for the (feat, batch) layout; matmul dtype.
    w1t = w1[1:, :].T.astype(compute_dtype)                           # (H1, in_dim)
    w2t = w2.T.astype(compute_dtype)                                  # (H2, H1)

    # Merge obs/act and transpose so batch occupies the lane axis.
    x_t = jnp.concatenate([obs, act], axis=-1).T.astype(compute_dtype)  # (in_dim, B)

    tb = _pick_tile(B, block_b)
    b_pad = _round_up(B, tb)
    if b_pad != B:
        x_t = jnp.pad(x_t, ((0, 0), (0, b_pad - B)))

    grid = (b_pad // tb,)
    const = lambda i: (0, 0)                  # weights: VMEM-resident, no re-DMA

    itm = jnp.dtype(compute_dtype).itemsize
    flops = 2 * b_pad * (in_dim * h1_dim + h1_dim * h2_dim + h2_dim)
    bytes_accessed = (b_pad * in_dim * itm                          # input stream
                      + (h1_dim * in_dim + h2_dim * h1_dim) * itm   # weights
                      + 4 * (h1_dim + h2_dim + h2_dim + 1)          # biases / w3
                      + 4 * b_pad)                                  # output row

    q_row = pl.pallas_call(
        mlp_q_kernel,
        out_shape=jax.ShapeDtypeStruct((1, b_pad), jnp.float32),
        grid=grid,
        in_specs=[
            pl.BlockSpec((in_dim, tb), lambda i: (0, i)),   # x^T batch tile
            pl.BlockSpec(w1t.shape, const),
            pl.BlockSpec(b1_col.shape, const),
            pl.BlockSpec(w2t.shape, const),
            pl.BlockSpec(b2_col.shape, const),
            pl.BlockSpec(w3_col.shape, const),
            pl.BlockSpec(b3_s.shape, const),
        ],
        out_specs=pl.BlockSpec((1, tb), lambda i: (0, i)),
        compiler_params=pltpu.CompilerParams(
            dimension_semantics=("parallel",)),
        cost_estimate=pl.CostEstimate(
            flops=flops, transcendentals=0, bytes_accessed=bytes_accessed),
    )(x_t, w1t, b1_col, w2t, b2_col, w3_col, b3_s)

    # Glue: drop batch padding and the size-1 feature dim (torch.squeeze(q, -1)).
    return q_row[0, :B]


# -------------------------- deterministic params ----------------------------

def init_linear(key, fan_in, fan_out):
    """Mimic torch.nn.Linear default init: U(-1/sqrt(fan_in), 1/sqrt(fan_in))."""
    kw, kb = jax.random.split(key)
    bound = 1.0 / jnp.sqrt(jnp.float32(fan_in))
    w = jax.random.uniform(kw, (fan_in, fan_out), jnp.float32, -bound, bound)
    b = jax.random.uniform(kb, (fan_out,), jnp.float32, -bound, bound)
    return w, b


def init_mlp_q_params(key, obs_dim, act_dim, hidden_sizes):
    sizes = [obs_dim + act_dim + 1] + list(hidden_sizes) + [1]
    params = []
    keys = jax.random.split(key, len(sizes) - 1)
    for k, fin, fout in zip(keys, sizes[:-1], sizes[1:]):
        w, b = init_linear(k, fin, fout)
        params += [w, b]
    return tuple(params)


def ref_forward(params, time, obs, act, scale=1.0):
    """Pure-JAX reference of the PyTorch module semantics."""
    w1, b1, w2, b2, w3, b3 = params
    time_expand = jnp.full_like(obs[..., :1], time / scale)
    x = jnp.concatenate([time_expand, obs, act], axis=-1)
    h = jnp.maximum(x @ w1 + b1, 0.0)
    h = jnp.maximum(h @ w2 + b2, 0.0)
    return jnp.squeeze(h @ w3 + b3, -1)


# --------------------------------- main -------------------------------------

if __name__ == "__main__":
    obs_dim, act_dim = 8, 4
    hidden_sizes = (32, 32)      # two hidden layers, ReLU activation
    time, scale = 3.0, 10.0

    key = jax.random.PRNGKey(0)
    kp, ko, ka, ko2, ka2 = jax.random.split(key, 5)
    params = init_mlp_q_params(kp, obs_dim, act_dim, hidden_sizes)

    # Small batch, f32 matmul path (tight numerical check, single tile).
    obs = jax.random.normal(ko, (8, obs_dim), jnp.float32)
    act = jax.random.normal(ka, (8, act_dim), jnp.float32)
    q = mlp_q_forward(params, time, obs, act, scale=scale,
                      compute_dtype=jnp.float32)
    jax.block_until_ready(q)
    q_ref = ref_forward(params, time, obs, act, scale=scale)
    assert q.shape == (8,)
    assert jnp.allclose(q, q_ref, atol=1e-4, rtol=1e-4)

    # Larger batch, default bf16 matmul operands (2 lane-dense tiles, grid=(2,)).
    obs2 = jax.random.normal(ko2, (200, obs_dim), jnp.float32)
    act2 = jax.random.normal(ka2, (200, act_dim), jnp.float32)
    q2 = mlp_q_forward(params, time, obs2, act2, scale=scale)
    jax.block_until_ready(q2)
    q2_ref = ref_forward(params, time, obs2, act2, scale=scale)
    assert q2.shape == (200,)
    assert jnp.allclose(q2, q2_ref, atol=5e-2, rtol=5e-2)   # bf16 tolerance

    # Same batch through the f32 path to keep a strict validation alongside bf16.
    q2f = mlp_q_forward(params, time, obs2, act2, scale=scale,
                        compute_dtype=jnp.float32)
    jax.block_until_ready(q2f)
    assert jnp.allclose(q2f, q2_ref, atol=1e-4, rtol=1e-4)

    print("KERNEL_OK")
</pallas_src>

<mosaic_0001>
module attributes {stable_mosaic.version = 11 : i64} {
  func.func @mlp_q_kernel(%arg0: i32, %arg1: memref<12x8xf32, #tpu.memory_space<vmem>>, %arg2: memref<32x12xf32, #tpu.memory_space<vmem>>, %arg3: memref<32x1xf32, #tpu.memory_space<vmem>>, %arg4: memref<32x32xf32, #tpu.memory_space<vmem>>, %arg5: memref<32x1xf32, #tpu.memory_space<vmem>>, %arg6: memref<32x1xf32, #tpu.memory_space<vmem>>, %arg7: memref<1x1xf32, #tpu.memory_space<vmem>>, %arg8: memref<1x8xf32, #tpu.memory_space<vmem>>) attributes {dimension_semantics = [#tpu.dimension_semantics<parallel>], iteration_bounds = array<i64: 1>, scalar_prefetch = 0 : i64, scratch_operands = 0 : i64, tpu.core_type = #tpu.core_type<tc>, window_params = [{transform_indices = @transform_0, window_bounds = array<i64: 12, 8>}, {pipeline_mode = #tpu.pipeline_mode<synchronous>, transform_indices = @transform_1, window_bounds = array<i64: 32, 12>}, {pipeline_mode = #tpu.pipeline_mode<synchronous>, transform_indices = @transform_2, window_bounds = array<i64: 32, 1>}, {pipeline_mode = #tpu.pipeline_mode<synchronous>, transform_indices = @transform_3, window_bounds = array<i64: 32, 32>}, {pipeline_mode = #tpu.pipeline_mode<synchronous>, transform_indices = @transform_4, window_bounds = array<i64: 32, 1>}, {pipeline_mode = #tpu.pipeline_mode<synchronous>, transform_indices = @transform_5, window_bounds = array<i64: 32, 1>}, {pipeline_mode = #tpu.pipeline_mode<synchronous>, transform_indices = @transform_6, window_bounds = array<i64: 1, 1>}, {transform_indices = @transform_7, window_bounds = array<i64: 1, 8>}]} {
    %c0 = arith.constant 0 : index
    %c0_0 = arith.constant 0 : index
    %0 = vector.load %arg2[%c0, %c0_0] : memref<32x12xf32, #tpu.memory_space<vmem>>, vector<32x12xf32>
    %c0_1 = arith.constant 0 : index
    %c0_2 = arith.constant 0 : index
    %1 = vector.load %arg1[%c0_1, %c0_2] : memref<12x8xf32, #tpu.memory_space<vmem>>, vector<12x8xf32>
    %cst = arith.constant dense<0.000000e+00> : vector<32x8xf32>
    %2 = tpu.matmul %0, %1, %cst {dimension_numbers = #tpu.dot_dimension_numbers<[1], [0], [0], [1], [0, 0, 1, 1], [], []>} : vector<32x12xf32>, vector<12x8xf32>, vector<32x8xf32> -> vector<32x8xf32>
    %c0_3 = arith.constant 0 : index
    %c0_4 = arith.constant 0 : index
    %3 = vector.load %arg3[%c0_3, %c0_4] : memref<32x1xf32, #tpu.memory_space<vmem>>, vector<32x1xf32>
    %4 = vector.broadcast %3 : vector<32x1xf32> to vector<32x8xf32>
    %5 = arith.addf %2, %4 : vector<32x8xf32>
    %cst_5 = arith.constant 0.000000e+00 : f32
    %6 = vector.broadcast %cst_5 : f32 to vector<32x8xf32>
    %7 = arith.maximumf %5, %6 : vector<32x8xf32>
    %c0_6 = arith.constant 0 : index
    %c0_7 = arith.constant 0 : index
    %8 = vector.load %arg4[%c0_6, %c0_7] : memref<32x32xf32, #tpu.memory_space<vmem>>, vector<32x32xf32>
    %cst_8 = arith.constant dense<0.000000e+00> : vector<32x8xf32>
    %9 = tpu.matmul %8, %7, %cst_8 {dimension_numbers = #tpu.dot_dimension_numbers<[1], [0], [0], [1], [0, 0, 1, 1], [], []>} : vector<32x32xf32>, vector<32x8xf32>, vector<32x8xf32> -> vector<32x8xf32>
    %c0_9 = arith.constant 0 : index
    %c0_10 = arith.constant 0 : index
    %10 = vector.load %arg5[%c0_9, %c0_10] : memref<32x1xf32, #tpu.memory_space<vmem>>, vector<32x1xf32>
    %11 = vector.broadcast %10 : vector<32x1xf32> to vector<32x8xf32>
    %12 = arith.addf %9, %11 : vector<32x8xf32>
    %cst_11 = arith.constant 0.000000e+00 : f32
    %13 = vector.broadcast %cst_11 : f32 to vector<32x8xf32>
    %14 = arith.maximumf %12, %13 : vector<32x8xf32>
    %c0_12 = arith.constant 0 : index
    %c0_13 = arith.constant 0 : index
    %15 = vector.load %arg6[%c0_12, %c0_13] : memref<32x1xf32, #tpu.memory_space<vmem>>, vector<32x1xf32>
    %16 = vector.broadcast %15 : vector<32x1xf32> to vector<32x8xf32>
    %17 = arith.mulf %14, %16 : vector<32x8xf32>
    %cst_14 = arith.constant dense<0.000000e+00> : vector<8xf32>
    %18 = vector.multi_reduction <add>, %17, %cst_14 [0] : vector<32x8xf32> to vector<8xf32>
    %19 = vector.shape_cast %18 : vector<8xf32> to vector<1x8xf32>
    %c0_15 = arith.constant 0 : index
    %c0_16 = arith.constant 0 : index
    %20 = vector.load %arg7[%c0_15, %c0_16] : memref<1x1xf32, #tpu.memory_space<vmem>>, vector<1x1xf32>
    %21 = vector.broadcast %20 : vector<1x1xf32> to vector<1x8xf32>
    %22 = arith.addf %19, %21 : vector<1x8xf32>
    %c0_17 = arith.constant 0 : index
    %c0_18 = arith.constant 0 : index
    %23 = vector.load %arg8[%c0_17, %c0_18] : memref<1x8xf32, #tpu.memory_space<vmem>>, vector<1x8xf32>
    tpu.vector_store %arg8[%c0_17, %c0_18], %22 {strides = array<i32>} : memref<1x8xf32, #tpu.memory_space<vmem>>, vector<1x8xf32>,
    return
  }
  func.func @transform_0(%arg0: i32) -> (i32, i32) {
    %c0_i32 = arith.constant 0 : i32
    %c0_i32_0 = arith.constant 0 : i32
    return %c0_i32, %arg0 : i32, i32
  }
  func.func @transform_1(%arg0: i32) -> (i32, i32) {
    %c0_i32 = arith.constant 0 : i32
    %c0_i32_0 = arith.constant 0 : i32
    %c0_i32_1 = arith.constant 0 : i32
    return %c0_i32, %c0_i32_0 : i32, i32
  }
  func.func @transform_2(%arg0: i32) -> (i32, i32) {
    %c0_i32 = arith.constant 0 : i32
    %c0_i32_0 = arith.constant 0 : i32
    %c0_i32_1 = arith.constant 0 : i32
    return %c0_i32, %c0_i32_0 : i32, i32
  }
  func.func @transform_3(%arg0: i32) -> (i32, i32) {
    %c0_i32 = arith.constant 0 : i32
    %c0_i32_0 = arith.constant 0 : i32
    %c0_i32_1 = arith.constant 0 : i32
    return %c0_i32, %c0_i32_0 : i32, i32
  }
  func.func @transform_4(%arg0: i32) -> (i32, i32) {
    %c0_i32 = arith.constant 0 : i32
    %c0_i32_0 = arith.constant 0 : i32
    %c0_i32_1 = arith.constant 0 : i32
    return %c0_i32, %c0_i32_0 : i32, i32
  }
  func.func @transform_5(%arg0: i32) -> (i32, i32) {
    %c0_i32 = arith.constant 0 : i32
    %c0_i32_0 = arith.constant 0 : i32
    %c0_i32_1 = arith.constant 0 : i32
    return %c0_i32, %c0_i32_0 : i32, i32
  }
  func.func @transform_6(%arg0: i32) -> (i32, i32) {
    %c0_i32 = arith.constant 0 : i32
    %c0_i32_0 = arith.constant 0 : i32
    %c0_i32_1 = arith.constant 0 : i32
    return %c0_i32, %c0_i32_0 : i32, i32
  }
  func.func @transform_7(%arg0: i32) -> (i32, i32) {
    %c0_i32 = arith.constant 0 : i32
    %c0_i32_0 = arith.constant 0 : i32
    return %c0_i32, %arg0 : i32, i32
  }
}

</mosaic_0001>

<llo_original>
// kernel: tpu_custom_call.1
$region0: #{tpu_custom_call.1}
  #allocation0 [shape = 'u32[]', space=smem, size = 0x4, offset = 0x4, fixed_abs, tag = 'smem constant byte address 0x4 - core index']
  #allocation1 [shape = 'u32[144,128]{1,0:T(1,128)}', space=vmem, size = 0x12000, scoped, tag = 'internal scratch']
  #allocation2 [shape = 'f32[1,1]{1,0:T(1,128)S(1)}', space=vmem, size = 0x200, scoped, tag = 'scoped memory for tpu_custom_call.1']
  %s0 = inlined_call_operand.vmem [shape: f32[12,8], index: 0, kind: input, shape index: {}]
  %s1 = inlined_call_operand.vmem [shape: f32[32,12], index: 1, kind: input, shape index: {}]
  %s2 = inlined_call_operand.vmem [shape: f32[32,1], index: 2, kind: input, shape index: {}]
  %s3 = inlined_call_operand.vmem [shape: f32[32,32], index: 3, kind: input, shape index: {}]
  %s4 = inlined_call_operand.vmem [shape: f32[32,1], index: 4, kind: input, shape index: {}]
  %s5 = inlined_call_operand.vmem [shape: f32[32,1], index: 5, kind: input, shape index: {}]
  %s6 = inlined_call_operand.<no memory space> [shape: f32[1,1], index: 6, kind: input, shape index: {}]
  %s7 = inlined_call_operand.hbm [shape: f32[1,8], index: 7, kind: output, shape index: {}]
  %s8 = sld [smem:[#allocation0]]
  $region38: #{tpu_custom_call.1} parent=0
    _
  %s10 = ssub.s32 1, %s8
  %s11 = scalar_select 0, %s10, %s8
  %v12 = vstv %s6
  %13 = vst [vmem:[#allocation2] sm:$0x1] %v12
  $region1: #{tpu_custom_call.1} parent=0
    #allocation3 [shape = 'u8[512]{0}', space=vmem, size = 0x400, scoped, tag = 'output window, operand 0, single buffered']
    #allocation4 [shape = 's32[1]{0}', space=sflag, size = 0x4, scoped, tag = 'scoped memory for tpu_custom_call.1']
    %14 = vsyncpa [#allocation4], 0
    // Predicated region
    $region2: #{tpu_custom_call.1} parent=1 // pred_check
      _
    $region3: #{tpu_custom_call.1} parent=1 // pred_check_branch
      %16 = sbr.rel (0) target = $region5
    $region4: #{tpu_custom_call.1} parent=1 // pred_region
      _
    $region5: #{tpu_custom_call.1} parent=1 // pred_fallthru
      _
    // Predicated region
    $region6: #{tpu_custom_call.1} parent=1 // pred_check
      _
    $region7: #{tpu_custom_call.1} parent=1 // pred_check_branch
      %18 = sbr.rel (0) target = $region9
    $region8: #{tpu_custom_call.1} parent=1 // pred_region
      _
    $region9: #{tpu_custom_call.1} parent=1 // pred_fallthru
      _
    // Predicated region
    $region10: #{tpu_custom_call.1} parent=1 // pred_check
      _
    $region11: #{tpu_custom_call.1} parent=1 // pred_check_branch
      %20 = sbr.rel (0) target = $region13
    $region12: #{tpu_custom_call.1} parent=1 // pred_region
      _
    $region13: #{tpu_custom_call.1} parent=1 // pred_fallthru
      _
    // Predicated region
    $region14: #{tpu_custom_call.1} parent=1 // pred_check
      _
    $region15: #{tpu_custom_call.1} parent=1 // pred_check_branch
      %22 = sbr.rel (0) target = $region17
    $region16: #{tpu_custom_call.1} parent=1 // pred_region
      _
    $region17: #{tpu_custom_call.1} parent=1 // pred_fallthru
      _
    // Predicated region
    $region18: #{tpu_custom_call.1} parent=1 // pred_check
      _
    $region19: #{tpu_custom_call.1} parent=1 // pred_check_branch
      %24 = sbr.rel (0) target = $region21
    $region20: #{tpu_custom_call.1} parent=1 // pred_region
      _
    $region21: #{tpu_custom_call.1} parent=1 // pred_fallthru
      _
    // Predicated region
    $region22: #{tpu_custom_call.1} parent=1 // pred_check
      _
    $region23: #{tpu_custom_call.1} parent=1 // pred_check_branch
      %26 = sbr.rel (0) target = $region25
    $region24: #{tpu_custom_call.1} parent=1 // pred_region
      _
    $region25: #{tpu_custom_call.1} parent=1 // pred_fallthru
      _
    // Predicated region
    $region26: #{tpu_custom_call.1} parent=1 // pred_check
      _
    $region27: #{tpu_custom_call.1} parent=1 // pred_check_branch
      %28 = sbr.rel (0) target = $region29
    $region28: #{tpu_custom_call.1} parent=1 // pred_region
      _
    $region29: #{tpu_custom_call.1} parent=1 // pred_fallthru
      _
    %v29 = vld [vmem:[%s1] sm:$0xff]
    %v30 = vld [vmem:[%s1 + $0x8] sm:$0xff]
    %v31 = vld [vmem:[%s1 + $0x10] sm:$0xff]
    %v32 = vld [vmem:[%s1 + $0x18] sm:$0xff]
    %v33 = vld [vmem:[%s0] sm:$0xff]
    %v34 = vld [vmem:[%s0 + $0x8] sm:$0xf]
    %v35 = vld [vmem:[%s2] sm:$0xff]
    %v36 = vld [vmem:[%s2 + $0x8] sm:$0xff]
    %v37 = vld [vmem:[%s2 + $0x10] sm:$0xff]
    %v38 = vld [vmem:[%s2 + $0x18] sm:$0xff]
    %40 = vset.pattern.permute.xlu0 0
    %41 = vperm.xlu0 %40, %v35
    %v42 = vpop.permute.xlu0 %41
    %45 = vset.pattern.permute.xlu0 0
    %46 = vperm.xlu0 %45, %v36
    %v47 = vpop.permute.xlu0 %46
    %50 = vset.pattern.permute.xlu0 0
    %51 = vperm.xlu0 %50, %v37
    %v52 = vpop.permute.xlu0 %51
    %55 = vset.pattern.permute.xlu0 0
    %56 = vperm.xlu0 %55, %v38
    %v57 = vpop.permute.xlu0 %56
    %vm59 = vcmask 97280
    %v61 = vsel %vm59, %v29, 0
    %v64 = vsel %vm59, %v30, 0
    %v67 = vsel %vm59, %v31, 0
    %v70 = vsel %vm59, %v32, 0
    %vm72 = vcmask 1043456
    %v74 = vsel %vm72, %v34, 0
    %76 = vmatprep.subr.mxu0 0.0
    %77 = vmatpush1.msra.mxu0 0.0
    %78 = vmatprep.subr.mxu0 0.0
    %79 = vmatpush1.msra.mxu0 0.0
    %80 = vmatprep.subr.mxu0 0.0
    %81 = vmatpush1.msra.mxu0 0.0
    %82 = vmatprep.subr.mxu0 0.0
    %83 = vmatpush1.msra.mxu0 0.0
    %84 = vmatprep.subr.mxu0 0.0
    %85 = vmatpush1.msra.mxu0 0.0
    %86 = vmatprep.subr.mxu0 0.0
    %87 = vmatpush1.msra.mxu0 0.0
    %88 = vmatprep.subr.mxu0 0.0
    %89 = vmatpush1.msra.mxu0 0.0
    %90 = vmatprep.subr.mxu0 0.0
    %91 = vmatpush1.msra.mxu0 0.0
    %92 = vmatprep.subr.mxu0 0.0
    %93 = vmatpush1.msra.mxu0 0.0
    %94 = vmatprep.subr.mxu0 0.0
    %95 = vmatpush1.msra.mxu0 0.0
    %96 = vmatprep.subr.mxu0 0.0
    %97 = vmatpush1.msra.mxu0 0.0
    %98 = vmatprep.subr.mxu0 0.0
    %99 = vmatpush1.msra.mxu0 0.0
    %100 = vmatprep.subr.mxu0 0.0
    %101 = vmatpush1.msra.mxu0 0.0
    %102 = vmatprep.subr.mxu0 0.0
    %103 = vmatpush1.msra.mxu0 0.0
    %104 = vmatprep.subr.mxu0 0.0
    %105 = vmatpush1.msra.mxu0 %v74
    %106 = vmatprep.subr.mxu0 0.0
    %107 = vmatpush1.msra.mxu0 %v33
    %108 = vmatprep.subr.mxu0 0.0
    %109 = vmatpush2.msra.mxu0 0.0
    %110 = vmatprep.subr.mxu0 0.0
    %111 = vmatpush2.msra.mxu0 0.0
    %112 = vmatprep.subr.mxu0 0.0
    %113 = vmatpush2.msra.mxu0 0.0
    %114 = vmatprep.subr.mxu0 0.0
    %115 = vmatpush2.msra.mxu0 0.0
    %116 = vmatprep.subr.mxu0 0.0
    %117 = vmatpush2.msra.mxu0 0.0
    %118 = vmatprep.subr.mxu0 0.0
    %119 = vmatpush2.msra.mxu0 0.0
    %120 = vmatprep.subr.mxu0 0.0
    %121 = vmatpush2.msra.mxu0 0.0
    %122 = vmatprep.subr.mxu0 0.0
    %123 = vmatpush2.msra.mxu0 0.0
    %124 = vmatprep.subr.mxu0 0.0
    %125 = vmatpush2.msra.mxu0 0.0
    %126 = vmatprep.subr.mxu0 0.0
    %127 = vmatpush2.msra.mxu0 0.0
    %128 = vmatprep.subr.mxu0 0.0
    %129 = vmatpush2.msra.mxu0 0.0
    %130 = vmatprep.subr.mxu0 0.0
    %131 = vmatpush2.msra.mxu0 0.0
    %132 = vmatprep.subr.mxu0 0.0
    %133 = vmatpush2.msra.mxu0 0.0
    %134 = vmatprep.subr.mxu0 0.0
    %135 = vmatpush2.msra.mxu0 0.0
    %136 = vmatprep.subr.mxu0 0.0
    %137 = vmatpush2.msra.mxu0 0.0
    %138 = vmatprep.subr.mxu0 0.0
    %139 = vmatpush2.msra.mxu0 0.0
    %140 = vmatprep.mubr.f32.mxu0 0.0
    %141 = vmatmul.mubr.f32.gmra.mxu0 %v61
    %v142 = vpop.f32.mrf.mxu0
    %v143 = vadd.f32 %v42, %v142
    %v144 = vpop.f32.mrf.mxu0
    %145 = vmatprep.mubr.f32.mxu0 0.0
    %146 = vmatmul.mubr.f32.gmra.mxu0 %v64
    %v147 = vpop.f32.mrf.mxu0
    %v148 = vadd.f32 %v47, %v147
    %v149 = vpop.f32.mrf.mxu0
    %150 = vmatprep.mubr.f32.mxu0 0.0
    %151 = vmatmul.mubr.f32.gmra.mxu0 %v67
    %v152 = vpop.f32.mrf.mxu0
    %v153 = vadd.f32 %v52, %v152
    %v154 = vpop.f32.mrf.mxu0
    %155 = vmatprep.mubr.f32.mxu0 0.0
    %156 = vmatmul.mubr.f32.gmra.mxu0 %v70
    %v157 = vpop.f32.mrf.mxu0
    %v158 = vadd.f32 %v57, %v157
    %v159 = vpop.f32.mrf.mxu0
    %160 = vdwg.mxu0
    %v161 = vmax.f32 %v143, 0.0
    %v162 = vmax.f32 %v148, 0.0
    %v163 = vmax.f32 %v153, 0.0
    %v164 = vmax.f32 %v158, 0.0
    %v165 = vld [vmem:[%s3] sm:$0xff]
    %v166 = vld [vmem:[%s3 + $0x8] sm:$0xff]
    %v167 = vld [vmem:[%s3 + $0x10] sm:$0xff]
    %v168 = vld [vmem:[%s3 + $0x18] sm:$0xff]
    %v169 = vld [vmem:[%s4] sm:$0xff]
    %v170 = vld [vmem:[%s4 + $0x8] sm:$0xff]
    %v171 = vld [vmem:[%s4 + $0x10] sm:$0xff]
    %v172 = vld [vmem:[%s4 + $0x18] sm:$0xff]
    %174 = vset.pattern.permute.xlu0 0
    %175 = vperm.xlu0 %174, %v169
    %v176 = vpop.permute.xlu0 %175
    %179 = vset.pattern.permute.xlu0 0
    %180 = vperm.xlu0 %179, %v170
    %v181 = vpop.permute.xlu0 %180
    %184 = vset.pattern.permute.xlu0 0
    %185 = vperm.xlu0 %184, %v171
    %v186 = vpop.permute.xlu0 %185
    %189 = vset.pattern.permute.xlu0 0
    %190 = vperm.xlu0 %189, %v172
    %v191 = vpop.permute.xlu0 %190
    %vm193 = vcmask 261120
    %v195 = vsel %vm193, %v165, 0
    %v198 = vsel %vm193, %v166, 0
    %v201 = vsel %vm193, %v167, 0
    %v204 = vsel %vm193, %v168, 0
    %206 = vmatprep.subr.mxu0 0.0
    %207 = vmatpush1.msra.mxu0 0.0
    %208 = vmatprep.subr.mxu0 0.0
    %209 = vmatpush1.msra.mxu0 0.0
    %210 = vmatprep.subr.mxu0 0.0
    %211 = vmatpush1.msra.mxu0 0.0
    %212 = vmatprep.subr.mxu0 0.0
    %213 = vmatpush1.msra.mxu0 0.0
    %214 = vmatprep.subr.mxu0 0.0
    %215 = vmatpush1.msra.mxu0 0.0
    %216 = vmatprep.subr.mxu0 0.0
    %217 = vmatpush1.msra.mxu0 0.0
    %218 = vmatprep.subr.mxu0 0.0
    %219 = vmatpush1.msra.mxu0 0.0
    %220 = vmatprep.subr.mxu0 0.0
    %221 = vmatpush1.msra.mxu0 0.0
    %222 = vmatprep.subr.mxu0 0.0
    %223 = vmatpush1.msra.mxu0 0.0
    %224 = vmatprep.subr.mxu0 0.0
    %225 = vmatpush1.msra.mxu0 0.0
    %226 = vmatprep.subr.mxu0 0.0
    %227 = vmatpush1.msra.mxu0 0.0
    %228 = vmatprep.subr.mxu0 0.0
    %229 = vmatpush1.msra.mxu0 0.0
    %230 = vmatprep.subr.mxu0 0.0
    %231 = vmatpush1.msra.mxu0 %v164
    %232 = vmatprep.subr.mxu0 0.0
    %233 = vmatpush1.msra.mxu0 %v163
    %234 = vmatprep.subr.mxu0 0.0
    %235 = vmatpush1.msra.mxu0 %v162
    %236 = vmatprep.subr.mxu0 0.0
    %237 = vmatpush1.msra.mxu0 %v161
    %238 = vmatprep.subr.mxu0 0.0
    %239 = vmatpush2.msra.mxu0 0.0
    %240 = vmatprep.subr.mxu0 0.0
    %241 = vmatpush2.msra.mxu0 0.0
    %242 = vmatprep.subr.mxu0 0.0
    %243 = vmatpush2.msra.mxu0 0.0
    %244 = vmatprep.subr.mxu0 0.0
    %245 = vmatpush2.msra.mxu0 0.0
    %246 = vmatprep.subr.mxu0 0.0
    %247 = vmatpush2.msra.mxu0 0.0
    %248 = vmatprep.subr.mxu0 0.0
    %249 = vmatpush2.msra.mxu0 0.0
    %250 = vmatprep.subr.mxu0 0.0
    %251 = vmatpush2.msra.mxu0 0.0
    %252 = vmatprep.subr.mxu0 0.0
    %253 = vmatpush2.msra.mxu0 0.0
    %254 = vmatprep.subr.mxu0 0.0
    %255 = vmatpush2.msra.mxu0 0.0
    %256 = vmatprep.subr.mxu0 0.0
    %257 = vmatpush2.msra.mxu0 0.0
    %258 = vmatprep.subr.mxu0 0.0
    %259 = vmatpush2.msra.mxu0 0.0
    %260 = vmatprep.subr.mxu0 0.0
    %261 = vmatpush2.msra.mxu0 0.0
    %262 = vmatprep.subr.mxu0 0.0
    %263 = vmatpush2.msra.mxu0 0.0
    %264 = vmatprep.subr.mxu0 0.0
    %265 = vmatpush2.msra.mxu0 0.0
    %266 = vmatprep.subr.mxu0 0.0
    %267 = vmatpush2.msra.mxu0 0.0
    %268 = vmatprep.subr.mxu0 0.0
    %269 = vmatpush2.msra.mxu0 0.0
    %270 = vmatprep.mubr.f32.mxu0 0.0
    %271 = vmatmul.mubr.f32.gmra.mxu0 %v195
    %v272 = vpop.f32.mrf.mxu0
    %v273 = vadd.f32 %v176, %v272
    %v274 = vpop.f32.mrf.mxu0
    %275 = vmatprep.mubr.f32.mxu0 0.0
    %276 = vmatmul.mubr.f32.gmra.mxu0 %v198
    %v277 = vpop.f32.mrf.mxu0
    %v278 = vadd.f32 %v181, %v277
    %v279 = vpop.f32.mrf.mxu0
    %280 = vmatprep.mubr.f32.mxu0 0.0
    %281 = vmatmul.mubr.f32.gmra.mxu0 %v201
    %v282 = vpop.f32.mrf.mxu0
    %v283 = vadd.f32 %v186, %v282
    %v284 = vpop.f32.mrf.mxu0
    %285 = vmatprep.mubr.f32.mxu0 0.0
    %286 = vmatmul.mubr.f32.gmra.mxu0 %v204
    %v287 = vpop.f32.mrf.mxu0
    %v288 = vadd.f32 %v191, %v287
    %v289 = vpop.f32.mrf.mxu0
    %290 = vdwg.mxu0
    %v291 = vmax.f32 %v273, 0.0
    %v292 = vmax.f32 %v278, 0.0
    %v293 = vmax.f32 %v283, 0.0
    %v294 = vmax.f32 %v288, 0.0
    %v295 = vld [vmem:[%s5] sm:$0xff]
    %v296 = vld [vmem:[%s5 + $0x8] sm:$0xff]
    %v297 = vld [vmem:[%s5 + $0x10] sm:$0xff]
    %v298 = vld [vmem:[%s5 + $0x18] sm:$0xff]
    %300 = vset.pattern.permute.xlu0 0
    %301 = vperm.xlu0 %300, %v295
    %v302 = vpop.permute.xlu0 %301
    %305 = vset.pattern.permute.xlu0 0
    %306 = vperm.xlu0 %305, %v296
    %v307 = vpop.permute.xlu0 %306
    %310 = vset.pattern.permute.xlu0 0
    %311 = vperm.xlu0 %310, %v297
    %v312 = vpop.permute.xlu0 %311
    %315 = vset.pattern.permute.xlu0 0
    %316 = vperm.xlu0 %315, %v298
    %v317 = vpop.permute.xlu0 %316
    %v319 = vmul.f32 %v291, %v302
    %v320 = vmul.f32 %v292, %v307
    %v321 = vmul.f32 %v293, %v312
    %v322 = vmul.f32 %v294, %v317
    %vm323 = vcmask 64512
    %v324 = vsel %vm323, %v319, 0.0
    %v325 = vsel %vm323, %v320, 0.0
    %v326 = vadd.f32 %v324, %v325
    %v327 = vsel %vm323, %v321, 0.0
    %v328 = vadd.f32 %v326, %v327
    %v329 = vsel %vm323, %v322, 0.0
    %v330 = vadd.f32 %v328, %v329
    %v331 = vrot.slane %v330, 4
    %v332 = vadd.f32 %v330, %v331
    %v333 = vrot.slane %v332, 2
    %v334 = vadd.f32 %v332, %v333
    %v335 = vrot.slane %v334, 1
    %v336 = vadd.f32 %v334, %v335
    %v337 = vld [vmem:[#allocation2] sm:$0x1]
    %339 = vset.pattern.permute.xlu0 0
    %340 = vperm.xlu0 %339, %v337
    %v341 = vpop.permute.xlu0 %340
    %v343 = vlaneseq
    %v344 = vshrl.u32 %v343, 7
    %v345 = vsub.s32 0, %v344
    %v346 = vrot.slane %v341, %v345
    %v347 = vadd.f32 %v336, %v346
    %vm348 = vcmask 57344
    %349 = vst.msk [vmem:[#allocation3] sm:$0x1] %vm348, %v347
    // Predicated region
    $region30: #{tpu_custom_call.1} parent=1 // pred_check
      _
    $region31: #{tpu_custom_call.1} parent=1 // pred_check_branch
      %351 = sbr.rel (0) target = $region33
    $region32: #{tpu_custom_call.1} parent=1 // pred_region
      %s353 = ssub.s32 16, 16
      %354 = vsyncadd [#allocation4], %s353
      %s356 = sshll.u32 [#allocation3], 4
      %s357 = int_to_ptr.vmem [resolvable:$true] %s356
      %359 = dma.vmem_to_hbm [thread:$0]  %s357, 16, %s7, [#allocation4]
    $region33: #{tpu_custom_call.1} parent=1 // pred_fallthru
      _
    // Predicated region
    $region34: #{tpu_custom_call.1} parent=1 // pred_check
      _
    $region35: #{tpu_custom_call.1} parent=1 // pred_check_branch
      %361 = sbr.rel (0) target = $region37
    $region36: #{tpu_custom_call.1} parent=1 // pred_region
      %362 = dma.done [#allocation4], 16
    $region37: #{tpu_custom_call.1} parent=1 // pred_fallthru
      _
    %363 = vsyncpa [#allocation4], 1

</llo_original>
